<compile_context>
chip_gen: v7x
topology: tpu7x:2x2x1
jax: 0.10.0
libtpu: 0.0.40
codegen_flags: <defaults>
</compile_context>

<pallas_src>
import jax
import jax.numpy as jnp
from jax.experimental import pallas as pl
from jax.experimental.pallas import tpu as pltpu


# ----------------------------------------------------------------------------
# Kernels
# ----------------------------------------------------------------------------

def ffn_resident_kernel(x_ref, w1_ref, b1_ref, w2_ref, b2_ref, o_ref):
    """Weights fully resident in VMEM; grid walks row tiles only."""
    x = x_ref[...].astype(jnp.bfloat16)
    w1 = w1_ref[...].astype(jnp.bfloat16)
    h = jnp.dot(x, w1, preferred_element_type=jnp.float32)
    h = jnp.maximum(h + b1_ref[...].astype(jnp.float32), 0.0)
    # TODO(synk): dropout is identity (inference mode); training-mode dropout
    # would use pltpu.prng_seed + pltpu.prng_random_bits on `h`.
    h = h.astype(jnp.bfloat16)
    w2 = w2_ref[...].astype(jnp.bfloat16)
    out = jnp.dot(h, w2, preferred_element_type=jnp.float32)
    out = out + b2_ref[...].astype(jnp.float32)
    o_ref[...] = out.astype(o_ref.dtype)


def ffn_streamed_kernel(x_ref, w1_ref, b1_ref, w2_ref, b2_ref, o_ref, acc_ref):
    """4H axis streamed as the last ("arbitrary") grid axis; f32 accumulator."""
    k = pl.program_id(1)

    @pl.when(k == 0)
    def _init():
        # Start the accumulator at b2 so no extra add is needed at finalize.
        acc_ref[...] = jnp.broadcast_to(
            b2_ref[...].astype(jnp.float32), acc_ref.shape)

    x = x_ref[...].astype(jnp.bfloat16)
    w1 = w1_ref[...].astype(jnp.bfloat16)
    h = jnp.dot(x, w1, preferred_element_type=jnp.float32)
    h = jnp.maximum(h + b1_ref[...].astype(jnp.float32), 0.0)
    # TODO(synk): dropout is identity (inference mode).
    h = h.astype(jnp.bfloat16)
    acc_ref[...] += jnp.dot(h, w2_ref[...].astype(jnp.bfloat16),
                            preferred_element_type=jnp.float32)

    @pl.when(k == pl.num_programs(1) - 1)
    def _finalize():
        o_ref[...] = acc_ref[...].astype(o_ref.dtype)


# ----------------------------------------------------------------------------
# Wrapper
# ----------------------------------------------------------------------------

def _round_up(a, b):
    return pl.cdiv(a, b) * b


def _vmem_capacity_bytes():
    try:
        return int(pltpu.get_tpu_info().vmem_capacity_bytes)
    except Exception:
        return 64 * 1024 * 1024  # conservative (v7x per-TensorCore)


def positionwise_feedforward(x, w1, b1, w2, b2, *,
                             force_streamed=False, row_tile=None, k_tile=None):
    """x: [B, S, H]. w1: [H, 4H], b1: [4H], w2: [4H, H], b2: [H].

    Weights are stored as the transpose of the PyTorch nn.Linear layout.
    """
    B, S, H = x.shape
    H4 = w1.shape[1]
    M = B * S

    x2d = x.reshape(M, H)
    b1_2d = b1.reshape(1, H4)
    b2_2d = b2.reshape(1, H)
    out_dtype = x.dtype

    xb = x2d.dtype.itemsize
    wb = w1.dtype.itemsize
    bb = b1.dtype.itemsize
    ob = jnp.dtype(out_dtype).itemsize

    cap = _vmem_capacity_bytes()
    vmem_budget = (cap * 3) // 4          # ~96 MiB on 128 MiB parts, 48 MiB on v7x
    tm_target = 1024 if cap >= (100 << 20) else 512
    m_cap = max(8, _round_up(M, 8))       # don't over-pad tiny inputs

    def tm_candidates():
        cands, t = [], tm_target
        while t >= 128:
            cands.append(t)
            t //= 2
        if not cands or cands[-1] != 128:
            cands.append(128)
        return cands

    # Conservative (double-buffered) VMEM estimates, incl. intermediate (tm,*) act.
    def resident_cost(tm):
        return (2 * (H * H4 + H4 * H) * wb
                + 2 * (H4 + H) * bb
                + 2 * tm * H * (xb + ob)
                + tm * H4 * (4 + 2))

    def streamed_cost(tm, tk):
        return (2 * (H * tk + tk * H) * wb
                + 2 * (tk + H) * bb
                + 2 * tm * H * (xb + ob)
                + tm * H * 4
                + tm * tk * (4 + 2))

    # ---------------- weight-resident fast path ----------------
    if not force_streamed:
        chosen_tm = None
        for t in tm_candidates():
            t = min(t, m_cap)
            if resident_cost(t) <= vmem_budget:
                chosen_tm = t
                break
        if row_tile is not None:
            chosen_tm = min(row_tile, m_cap) if chosen_tm is not None else None
        if chosen_tm is not None:
            tm = chosen_tm
            m_pad = _round_up(M, tm)
            x_in = x2d if m_pad == M else jnp.pad(x2d, ((0, m_pad - M), (0, 0)))
            out2d = pl.pallas_call(
                ffn_resident_kernel,
                out_shape=jax.ShapeDtypeStruct((m_pad, H), out_dtype),
                grid_spec=pltpu.PrefetchScalarGridSpec(
                    num_scalar_prefetch=0,
                    grid=(m_pad // tm,),
                    in_specs=[
                        pl.BlockSpec((tm, H), lambda i: (i, 0)),   # x rows
                        pl.BlockSpec((H, H4), lambda i: (0, 0)),   # W1 (resident)
                        pl.BlockSpec((1, H4), lambda i: (0, 0)),   # b1
                        pl.BlockSpec((H4, H), lambda i: (0, 0)),   # W2 (resident)
                        pl.BlockSpec((1, H), lambda i: (0, 0)),    # b2
                    ],
                    out_specs=pl.BlockSpec((tm, H), lambda i: (i, 0)),
                ),
                compiler_params=pltpu.CompilerParams(
                    dimension_semantics=("parallel",),
                    vmem_limit_bytes=int(vmem_budget),
                ),
            )(x_in, w1, b1_2d, w2, b2_2d)
            return out2d[:M].reshape(B, S, H)

    # ---------------- streamed-K fallback ----------------
    if k_tile is not None:
        tk = k_tile
    else:
        tk = None
        for cand in (2048, 1024, 512, 256, 128):
            if H4 % cand == 0:
                tk = cand
                break
        if tk is None:
            tk = min(512, H4)
    k_pad = _round_up(H4, tk)

    w1_in, b1_in, w2_in = w1, b1_2d, w2
    if k_pad != H4:
        # Rare fallback: zero-padded W1 cols / b1 / W2 rows are exact no-ops
        # through relu + accumulation (costs one extra weight pass through HBM).
        w1_in = jnp.pad(w1, ((0, 0), (0, k_pad - H4)))
        b1_in = jnp.pad(b1_2d, ((0, 0), (0, k_pad - H4)))
        w2_in = jnp.pad(w2, ((0, k_pad - H4), (0, 0)))

    if row_tile is not None:
        tm = min(row_tile, m_cap)
    else:
        tm = None
        for t in tm_candidates():
            t = min(t, m_cap)
            if streamed_cost(t, tk) <= vmem_budget:
                tm = t
                break
        if tm is None:
            tm = min(128, m_cap)

    m_pad = _round_up(M, tm)
    x_in = x2d if m_pad == M else jnp.pad(x2d, ((0, m_pad - M), (0, 0)))

    out2d = pl.pallas_call(
        ffn_streamed_kernel,
        out_shape=jax.ShapeDtypeStruct((m_pad, H), out_dtype),
        grid_spec=pltpu.PrefetchScalarGridSpec(
            num_scalar_prefetch=0,
            grid=(m_pad // tm, k_pad // tk),
            in_specs=[
                pl.BlockSpec((tm, H), lambda i, k: (i, 0)),   # x rows (resident over k)
                pl.BlockSpec((H, tk), lambda i, k: (0, k)),   # W1 column chunk
                pl.BlockSpec((1, tk), lambda i, k: (0, k)),   # b1 chunk
                pl.BlockSpec((tk, H), lambda i, k: (k, 0)),   # W2 row chunk
                pl.BlockSpec((1, H), lambda i, k: (0, 0)),    # b2 (acc init)
            ],
            out_specs=pl.BlockSpec((tm, H), lambda i, k: (i, 0)),
            scratch_shapes=[pltpu.VMEM((tm, H), jnp.float32)],
        ),
        compiler_params=pltpu.CompilerParams(
            dimension_semantics=("parallel", "arbitrary"),
            vmem_limit_bytes=int(vmem_budget),
        ),
    )(x_in, w1_in, b1_in, w2_in, b2_2d)

    return out2d[:M].reshape(B, S, H)


# ----------------------------------------------------------------------------
# Test
# ----------------------------------------------------------------------------

def _init_params(key, hidden_size):
    kw1, kb1, kw2, kb2 = jax.random.split(key, 4)
    bound1 = 1.0 / (hidden_size ** 0.5)
    bound2 = 1.0 / ((4 * hidden_size) ** 0.5)
    w1 = jax.random.uniform(kw1, (hidden_size, 4 * hidden_size),
                            jnp.float32, -bound1, bound1)
    b1 = jax.random.uniform(kb1, (4 * hidden_size,), jnp.float32, -bound1, bound1)
    w2 = jax.random.uniform(kw2, (4 * hidden_size, hidden_size),
                            jnp.float32, -bound2, bound2)
    b2 = jax.random.uniform(kb2, (hidden_size,), jnp.float32, -bound2, bound2)
    return w1, b1, w2, b2


def _reference(x, w1, b1, w2, b2):
    h = jnp.maximum(x.reshape(-1, x.shape[-1]) @ w1 + b1, 0.0)
    return (h @ w2 + b2).reshape(x.shape)


if __name__ == "__main__":
    key = jax.random.PRNGKey(0)
    k_main, k_params, k_x2, k_params2 = jax.random.split(key, 4)

    # --- primary check: small module-consistent shapes (weight-resident path) ---
    hidden_size, batch, seq = 32, 2, 8
    w1, b1, w2, b2 = _init_params(k_params, hidden_size)
    x = jax.random.normal(k_main, (batch, seq, hidden_size), jnp.float32)

    out = positionwise_feedforward(x, w1, b1, w2, b2)
    out = jax.block_until_ready(out)
    ref = _reference(x, w1, b1, w2, b2)
    tol = 2e-2 * max(1.0, (hidden_size / 128.0) ** 0.5)
    assert out.shape == (batch, seq, hidden_size)
    assert jnp.allclose(out, ref, atol=tol, rtol=tol), (
        float(jnp.max(jnp.abs(out - ref))))

    # --- secondary check: force the streamed-K path (multi k-step, multi row-tile) ---
    hidden2, batch2, seq2 = 128, 2, 24
    w1b_, b1b_, w2b_, b2b_ = _init_params(k_params2, hidden2)
    x2 = jax.random.normal(k_x2, (batch2, seq2, hidden2), jnp.float32)

    out2 = positionwise_feedforward(x2, w1b_, b1b_, w2b_, b2b_,
                                    force_streamed=True, row_tile=16, k_tile=128)
    out2 = jax.block_until_ready(out2)
    ref2 = _reference(x2, w1b_, b1b_, w2b_, b2b_)
    tol2 = 2e-2 * max(1.0, (hidden2 / 128.0) ** 0.5)
    assert out2.shape == (batch2, seq2, hidden2)
    assert jnp.allclose(out2, ref2, atol=tol2, rtol=tol2), (
        float(jnp.max(jnp.abs(out2 - ref2))))

    print("KERNEL_OK")
</pallas_src>

<mosaic_0001>
module attributes {stable_mosaic.version = 11 : i64} {
  func.func @ffn_resident_kernel(%arg0: i32, %arg1: memref<16x32xf32, #tpu.memory_space<vmem>>, %arg2: memref<32x128xf32, #tpu.memory_space<vmem>>, %arg3: memref<1x128xf32, #tpu.memory_space<vmem>>, %arg4: memref<128x32xf32, #tpu.memory_space<vmem>>, %arg5: memref<1x32xf32, #tpu.memory_space<vmem>>, %arg6: memref<16x32xf32, #tpu.memory_space<vmem>>) attributes {dimension_semantics = [#tpu.dimension_semantics<parallel>], iteration_bounds = array<i64: 1>, scalar_prefetch = 0 : i64, scratch_operands = 0 : i64, tpu.core_type = #tpu.core_type<tc>, window_params = [{transform_indices = @transform_0, window_bounds = array<i64: 16, 32>}, {pipeline_mode = #tpu.pipeline_mode<synchronous>, transform_indices = @transform_1, window_bounds = array<i64: 32, 128>}, {pipeline_mode = #tpu.pipeline_mode<synchronous>, transform_indices = @transform_2, window_bounds = array<i64: 1, 128>}, {pipeline_mode = #tpu.pipeline_mode<synchronous>, transform_indices = @transform_3, window_bounds = array<i64: 128, 32>}, {pipeline_mode = #tpu.pipeline_mode<synchronous>, transform_indices = @transform_4, window_bounds = array<i64: 1, 32>}, {transform_indices = @transform_5, window_bounds = array<i64: 16, 32>}]} {
    %c0 = arith.constant 0 : index
    %c0_0 = arith.constant 0 : index
    %0 = vector.load %arg1[%c0, %c0_0] : memref<16x32xf32, #tpu.memory_space<vmem>>, vector<16x32xf32>
    %1 = arith.truncf %0 : vector<16x32xf32> to vector<16x32xbf16>
    %c0_1 = arith.constant 0 : index
    %c0_2 = arith.constant 0 : index
    %2 = vector.load %arg2[%c0_1, %c0_2] : memref<32x128xf32, #tpu.memory_space<vmem>>, vector<32x128xf32>
    %3 = arith.truncf %2 : vector<32x128xf32> to vector<32x128xbf16>
    %cst = arith.constant dense<0.000000e+00> : vector<16x128xf32>
    %4 = tpu.matmul %1, %3, %cst {dimension_numbers = #tpu.dot_dimension_numbers<[1], [0], [0], [1], [0, 0, 1, 1], [], []>} : vector<16x32xbf16>, vector<32x128xbf16>, vector<16x128xf32> -> vector<16x128xf32>
    %c0_3 = arith.constant 0 : index
    %c0_4 = arith.constant 0 : index
    %5 = vector.load %arg3[%c0_3, %c0_4] : memref<1x128xf32, #tpu.memory_space<vmem>>, vector<1x128xf32>
    %6 = vector.broadcast %5 : vector<1x128xf32> to vector<16x128xf32>
    %7 = arith.addf %4, %6 : vector<16x128xf32>
    %cst_5 = arith.constant 0.000000e+00 : f32
    %8 = vector.broadcast %cst_5 : f32 to vector<16x128xf32>
    %9 = arith.maximumf %7, %8 : vector<16x128xf32>
    %10 = arith.truncf %9 : vector<16x128xf32> to vector<16x128xbf16>
    %c0_6 = arith.constant 0 : index
    %c0_7 = arith.constant 0 : index
    %11 = vector.load %arg4[%c0_6, %c0_7] : memref<128x32xf32, #tpu.memory_space<vmem>>, vector<128x32xf32>
    %12 = arith.truncf %11 : vector<128x32xf32> to vector<128x32xbf16>
    %cst_8 = arith.constant dense<0.000000e+00> : vector<16x32xf32>
    %13 = tpu.matmul %10, %12, %cst_8 {dimension_numbers = #tpu.dot_dimension_numbers<[1], [0], [0], [1], [0, 0, 1, 1], [], []>} : vector<16x128xbf16>, vector<128x32xbf16>, vector<16x32xf32> -> vector<16x32xf32>
    %c0_9 = arith.constant 0 : index
    %c0_10 = arith.constant 0 : index
    %14 = vector.load %arg5[%c0_9, %c0_10] : memref<1x32xf32, #tpu.memory_space<vmem>>, vector<1x32xf32>
    %15 = vector.broadcast %14 : vector<1x32xf32> to vector<16x32xf32>
    %16 = arith.addf %13, %15 : vector<16x32xf32>
    %c0_11 = arith.constant 0 : index
    %c0_12 = arith.constant 0 : index
    %17 = vector.load %arg6[%c0_11, %c0_12] : memref<16x32xf32, #tpu.memory_space<vmem>>, vector<16x32xf32>
    tpu.vector_store %arg6[%c0_11, %c0_12], %16 {strides = array<i32>} : memref<16x32xf32, #tpu.memory_space<vmem>>, vector<16x32xf32>,
    return
  }
  func.func @transform_0(%arg0: i32) -> (i32, i32) {
    %c0_i32 = arith.constant 0 : i32
    %c0_i32_0 = arith.constant 0 : i32
    return %arg0, %c0_i32 : i32, i32
  }
  func.func @transform_1(%arg0: i32) -> (i32, i32) {
    %c0_i32 = arith.constant 0 : i32
    %c0_i32_0 = arith.constant 0 : i32
    %c0_i32_1 = arith.constant 0 : i32
    return %c0_i32, %c0_i32_0 : i32, i32
  }
  func.func @transform_2(%arg0: i32) -> (i32, i32) {
    %c0_i32 = arith.constant 0 : i32
    %c0_i32_0 = arith.constant 0 : i32
    %c0_i32_1 = arith.constant 0 : i32
    return %c0_i32, %c0_i32_0 : i32, i32
  }
  func.func @transform_3(%arg0: i32) -> (i32, i32) {
    %c0_i32 = arith.constant 0 : i32
    %c0_i32_0 = arith.constant 0 : i32
    %c0_i32_1 = arith.constant 0 : i32
    return %c0_i32, %c0_i32_0 : i32, i32
  }
  func.func @transform_4(%arg0: i32) -> (i32, i32) {
    %c0_i32 = arith.constant 0 : i32
    %c0_i32_0 = arith.constant 0 : i32
    %c0_i32_1 = arith.constant 0 : i32
    return %c0_i32, %c0_i32_0 : i32, i32
  }
  func.func @transform_5(%arg0: i32) -> (i32, i32) {
    %c0_i32 = arith.constant 0 : i32
    %c0_i32_0 = arith.constant 0 : i32
    return %arg0, %c0_i32 : i32, i32
  }
}

</mosaic_0001>

<llo_original>
// kernel: tpu_custom_call.1
$region0: #{tpu_custom_call.1}
  #allocation0 [shape = 'u32[]', space=smem, size = 0x4, offset = 0x4, fixed_abs, tag = 'smem constant byte address 0x4 - core index']
  #allocation1 [shape = 'u32[144,128]{1,0:T(1,128)}', space=vmem, size = 0x12000, scoped, tag = 'internal scratch']
  %s0 = inlined_call_operand.vmem [shape: f32[16,32], index: 0, kind: input, shape index: {}]
  %s1 = inlined_call_operand.vmem [shape: f32[32,128], index: 1, kind: input, shape index: {}]
  %s2 = inlined_call_operand.vmem [shape: f32[1,128], index: 2, kind: input, shape index: {}]
  %s3 = inlined_call_operand.vmem [shape: f32[128,32], index: 3, kind: input, shape index: {}]
  %s4 = inlined_call_operand.vmem [shape: f32[1,32], index: 4, kind: input, shape index: {}]
  %s5 = inlined_call_operand.hbm [shape: f32[16,32], index: 5, kind: output, shape index: {}]
  %s6 = sld [smem:[#allocation0]]
  $region30: #{tpu_custom_call.1} parent=0
    _
  %s8 = ssub.s32 1, %s6
  %s9 = scalar_select 0, %s8, %s6
  $region1: #{tpu_custom_call.1} parent=0
    #allocation2 [shape = 'u8[8192]{0}', space=vmem, size = 0x2000, scoped, tag = 'output window, operand 0, single buffered']
    #allocation3 [shape = 's32[1]{0}', space=sflag, size = 0x4, scoped, tag = 'scoped memory for tpu_custom_call.1']
    %10 = vsyncpa [#allocation3], 0
    // Predicated region
    $region2: #{tpu_custom_call.1} parent=1 // pred_check
      _
    $region3: #{tpu_custom_call.1} parent=1 // pred_check_branch
      %12 = sbr.rel (0) target = $region5
    $region4: #{tpu_custom_call.1} parent=1 // pred_region
      _
    $region5: #{tpu_custom_call.1} parent=1 // pred_fallthru
      _
    // Predicated region
    $region6: #{tpu_custom_call.1} parent=1 // pred_check
      _
    $region7: #{tpu_custom_call.1} parent=1 // pred_check_branch
      %14 = sbr.rel (0) target = $region9
    $region8: #{tpu_custom_call.1} parent=1 // pred_region
      _
    $region9: #{tpu_custom_call.1} parent=1 // pred_fallthru
      _
    // Predicated region
    $region10: #{tpu_custom_call.1} parent=1 // pred_check
      _
    $region11: #{tpu_custom_call.1} parent=1 // pred_check_branch
      %16 = sbr.rel (0) target = $region13
    $region12: #{tpu_custom_call.1} parent=1 // pred_region
      _
    $region13: #{tpu_custom_call.1} parent=1 // pred_fallthru
      _
    // Predicated region
    $region14: #{tpu_custom_call.1} parent=1 // pred_check
      _
    $region15: #{tpu_custom_call.1} parent=1 // pred_check_branch
      %18 = sbr.rel (0) target = $region17
    $region16: #{tpu_custom_call.1} parent=1 // pred_region
      _
    $region17: #{tpu_custom_call.1} parent=1 // pred_fallthru
      _
    // Predicated region
    $region18: #{tpu_custom_call.1} parent=1 // pred_check
      _
    $region19: #{tpu_custom_call.1} parent=1 // pred_check_branch
      %20 = sbr.rel (0) target = $region21
    $region20: #{tpu_custom_call.1} parent=1 // pred_region
      _
    $region21: #{tpu_custom_call.1} parent=1 // pred_fallthru
      _
    %v22 = vld [vmem:[%s0] sm:$0xff]
    %v23 = vld [vmem:[%s0 + $0x8] sm:$0xff]
    %v24 = vpack.c.bf16 %v23, %v22
    %v25 = vld [vmem:[%s1] sm:$0xff]
    %v26 = vld [vmem:[%s1 + $0x8] sm:$0xff]
    %v27 = vld [vmem:[%s1 + $0x10] sm:$0xff]
    %v28 = vld [vmem:[%s1 + $0x18] sm:$0xff]
    %v29 = vpack.c.bf16 %v26, %v25
    %v30 = vpack.c.bf16 %v28, %v27
    %v31 = vld [vmem:[%s2] sm:$0x1]
    %v33 = vlaneseq
    %v34 = vshrl.u32 %v33, 7
    %v35 = vsub.s32 0, %v34
    %v36 = vrot.slane %v31, %v35
    %vm38 = vcmask 261120
    %v40 = vsel %vm38, %v24, 0
    %42 = vmatprep.subr.bf16.mxu0 0
    %43 = vmatpush1.bf16.msra.mxu0 %v29
    %44 = vmatprep.subr.bf16.mxu0 0
    %45 = vmatpush1.bf16.msra.mxu0 %v30
    %46 = vmatprep.subr.bf16.mxu0 0
    %47 = vmatpush1.bf16.msra.mxu0 0
    %48 = vmatprep.subr.bf16.mxu0 0
    %49 = vmatpush1.bf16.msra.mxu0 0
    %50 = vmatprep.subr.bf16.mxu0 0
    %51 = vmatpush1.bf16.msra.mxu0 0
    %52 = vmatprep.subr.bf16.mxu0 0
    %53 = vmatpush1.bf16.msra.mxu0 0
    %54 = vmatprep.subr.bf16.mxu0 0
    %55 = vmatpush1.bf16.msra.mxu0 0
    %56 = vmatprep.subr.bf16.mxu0 0
    %57 = vmatpush1.bf16.msra.mxu0 0
    %58 = vmatprep.subr.bf16.mxu0 0
    %59 = vmatpush1.bf16.msra.mxu0 0
    %60 = vmatprep.subr.bf16.mxu0 0
    %61 = vmatpush1.bf16.msra.mxu0 0
    %62 = vmatprep.subr.bf16.mxu0 0
    %63 = vmatpush1.bf16.msra.mxu0 0
    %64 = vmatprep.subr.bf16.mxu0 0
    %65 = vmatpush1.bf16.msra.mxu0 0
    %66 = vmatprep.subr.bf16.mxu0 0
    %67 = vmatpush1.bf16.msra.mxu0 0
    %68 = vmatprep.subr.bf16.mxu0 0
    %69 = vmatpush1.bf16.msra.mxu0 0
    %70 = vmatprep.subr.bf16.mxu0 0
    %71 = vmatpush1.bf16.msra.mxu0 0
    %72 = vmatprep.subr.bf16.mxu0 0
    %73 = vmatpush1.bf16.msra.mxu0 0
    %74 = vmatprep.mubr.bf16.mxu0 0
    %75 = vmatmul.mubr.bf16.gmra.mrb[0].mxu0 %v40
    %v76 = vpop.f32.mrb[0].mxu0
    %v77 = vadd.f32 %v36, %v76
    %v78 = vpop.f32.mrb[0].mxu0
    %v79 = vpop.f32.mrb[0].mxu0
    %v80 = vadd.f32 %v36, %v79
    %v81 = vpop.f32.mrb[0].mxu0
    %82 = vdwg.mxu0
    %v83 = vmax.f32 %v77, 0.0
    %v84 = vmax.f32 %v80, 0.0
    %v85 = vpack.c.bf16 %v84, %v83
    %v86 = vld [vmem:[%s3] sm:$0xff]
    %v87 = vld [vmem:[%s3 + $0x8] sm:$0xff]
    %v88 = vld [vmem:[%s3 + $0x10] sm:$0xff]
    %v89 = vld [vmem:[%s3 + $0x18] sm:$0xff]
    %v90 = vld [vmem:[%s3 + $0x20] sm:$0xff]
    %v91 = vld [vmem:[%s3 + $0x28] sm:$0xff]
    %v92 = vld [vmem:[%s3 + $0x30] sm:$0xff]
    %v93 = vld [vmem:[%s3 + $0x38] sm:$0xff]
    %v94 = vld [vmem:[%s3 + $0x40] sm:$0xff]
    %v95 = vld [vmem:[%s3 + $0x48] sm:$0xff]
    %v96 = vld [vmem:[%s3 + $0x50] sm:$0xff]
    %v97 = vld [vmem:[%s3 + $0x58] sm:$0xff]
    %v98 = vld [vmem:[%s3 + $0x60] sm:$0xff]
    %v99 = vld [vmem:[%s3 + $0x68] sm:$0xff]
    %v100 = vld [vmem:[%s3 + $0x70] sm:$0xff]
    %v101 = vld [vmem:[%s3 + $0x78] sm:$0xff]
    %v102 = vpack.c.bf16 %v87, %v86
    %v103 = vpack.c.bf16 %v89, %v88
    %v104 = vpack.c.bf16 %v91, %v90
    %v105 = vpack.c.bf16 %v93, %v92
    %v106 = vpack.c.bf16 %v95, %v94
    %v107 = vpack.c.bf16 %v97, %v96
    %v108 = vpack.c.bf16 %v99, %v98
    %v109 = vpack.c.bf16 %v101, %v100
    %v110 = vld [vmem:[%s4] sm:$0x1]
    %v112 = vlaneseq
    %v113 = vshrl.u32 %v112, 7
    %v114 = vsub.s32 0, %v113
    %v115 = vrot.slane %v110, %v114
    %117 = vmatprep.subr.bf16.mxu0 0
    %118 = vmatpush1.bf16.msra.mxu0 %v102
    %119 = vmatprep.subr.bf16.mxu0 0
    %120 = vmatpush1.bf16.msra.mxu0 %v103
    %121 = vmatprep.subr.bf16.mxu0 0
    %122 = vmatpush1.bf16.msra.mxu0 %v104
    %123 = vmatprep.subr.bf16.mxu0 0
    %124 = vmatpush1.bf16.msra.mxu0 %v105
    %125 = vmatprep.subr.bf16.mxu0 0
    %126 = vmatpush1.bf16.msra.mxu0 %v106
    %127 = vmatprep.subr.bf16.mxu0 0
    %128 = vmatpush1.bf16.msra.mxu0 %v107
    %129 = vmatprep.subr.bf16.mxu0 0
    %130 = vmatpush1.bf16.msra.mxu0 %v108
    %131 = vmatprep.subr.bf16.mxu0 0
    %132 = vmatpush1.bf16.msra.mxu0 %v109
    %133 = vmatprep.subr.bf16.mxu0 0
    %134 = vmatpush1.bf16.msra.mxu0 0
    %135 = vmatprep.subr.bf16.mxu0 0
    %136 = vmatpush1.bf16.msra.mxu0 0
    %137 = vmatprep.subr.bf16.mxu0 0
    %138 = vmatpush1.bf16.msra.mxu0 0
    %139 = vmatprep.subr.bf16.mxu0 0
    %140 = vmatpush1.bf16.msra.mxu0 0
    %141 = vmatprep.subr.bf16.mxu0 0
    %142 = vmatpush1.bf16.msra.mxu0 0
    %143 = vmatprep.subr.bf16.mxu0 0
    %144 = vmatpush1.bf16.msra.mxu0 0
    %145 = vmatprep.subr.bf16.mxu0 0
    %146 = vmatpush1.bf16.msra.mxu0 0
    %147 = vmatprep.subr.bf16.mxu0 0
    %148 = vmatpush1.bf16.msra.mxu0 0
    %149 = vmatprep.mubr.bf16.mxu0 0
    %150 = vmatmul.mubr.bf16.gmra.mrb[0].mxu0 %v85
    %v151 = vpop.f32.mrb[0].mxu0
    %v152 = vadd.f32 %v115, %v151
    %v153 = vpop.f32.mrb[0].mxu0
    %v154 = vpop.f32.mrb[0].mxu0
    %v155 = vadd.f32 %v115, %v154
    %v156 = vpop.f32.mrb[0].mxu0
    %157 = vdwg.mxu0
    %158 = vst.msk [vmem:[#allocation2] sm:$0xff] %vm38, %v152
    %159 = vst.msk [vmem:[#allocation2 + $0x8] sm:$0xff] %vm38, %v155
    // Predicated region
    $region22: #{tpu_custom_call.1} parent=1 // pred_check
      _
    $region23: #{tpu_custom_call.1} parent=1 // pred_check_branch
      %161 = sbr.rel (0) target = $region25
    $region24: #{tpu_custom_call.1} parent=1 // pred_region
      %s163 = ssub.s32 256, 256
      %164 = vsyncadd [#allocation3], %s163
      %s165 = sshll.u32 [#allocation2], 4
      %s166 = int_to_ptr.vmem [resolvable:$true] %s165
      %171 = dma.vmem_to_hbm [thread:$0]  %s166, 256, %s5, [#allocation3], 128, 128, 8
    $region25: #{tpu_custom_call.1} parent=1 // pred_fallthru
      _
    // Predicated region
    $region26: #{tpu_custom_call.1} parent=1 // pred_check
      _
    $region27: #{tpu_custom_call.1} parent=1 // pred_check_branch
      %173 = sbr.rel (0) target = $region29
    $region28: #{tpu_custom_call.1} parent=1 // pred_region
      %174 = dma.done [#allocation3], 256
    $region29: #{tpu_custom_call.1} parent=1 // pred_fallthru
      _
    %175 = vsyncpa [#allocation3], 1

</llo_original>
